<compile_context>
chip_gen: v6e
topology: v6e:2x2x1
jax: 0.10.0
libtpu: 0.0.40
codegen_flags: <defaults>
</compile_context>

<pallas_src>
import math

import jax
import jax.numpy as jnp
from jax import lax
from jax.experimental import pallas as pl
from jax.experimental.pallas import tpu as pltpu

LANE = 128       # TPU lane width (last dim)
SUBLANE = 8      # TPU sublane granularity (second-to-last dim)
TM_TARGET = 512  # row-tile size (~85% of HBM roofline per measured curve)


def _round_up(x, m):
    return (x + m - 1) // m * m


def _as_i32(v):
    """Wrap an arbitrary Python int into signed-int32 range (two's complement)."""
    v &= 0xFFFFFFFF
    return v - (1 << 32) if v >= (1 << 31) else v


# -----------------------------------------------------------------------------
# Deterministic Bernoulli(0.5) keep-mask from integer coordinates.
# Shared verbatim by the kernel and the pure-JAX reference.
# -----------------------------------------------------------------------------
def _keep_mask_i32(rows, cols, seed, layer_idx, n_cols):
    A = jnp.int32(_as_i32(0x9E3779B1))
    B = jnp.int32(_as_i32(0x85EBCA6B))
    C = jnp.int32(_as_i32(0xC2B2AE35))
    salt = seed + jnp.int32(_as_i32(0x9E3779B9 * (layer_idx + 1)))
    x = rows * jnp.int32(n_cols) + cols          # unique element id in this layer
    x = x * A + salt                             # int32 wraps (two's complement)
    x = x ^ (x >> 16)
    x = x * B
    x = x ^ (x >> 13)
    x = x * C                                    # end on a multiply: bit 31 well mixed
    return x >= 0                                # keep with probability 1/2


# -----------------------------------------------------------------------------
# Fused Prenet kernel: per M-tile do (dot -> relu -> dropout) for every layer.
# -----------------------------------------------------------------------------
def _make_prenet_kernel(n_layers, tm):
    def kernel(seed_ref, x_ref, *rest):
        w_refs = rest[:n_layers]
        o_ref = rest[n_layers]

        seed = seed_ref[0]                       # SMEM scalar (prefetched)
        row0 = pl.program_id(0) * tm             # global row offset of this tile

        h = x_ref[...]                           # (tm, K_pad) f32
        for li in range(n_layers):
            w = w_refs[li][...]                  # (Kl_pad, Nl_pad) bf16, VMEM-resident
            # Linear (no bias): bf16 inputs, f32 MXU accumulation.
            y = jnp.dot(h.astype(jnp.bfloat16), w,
                        preferred_element_type=jnp.float32)
            # ReLU
            y = jnp.maximum(y, 0.0)
            # Dropout p=0.5 (always on): integer hash -> keep mask, survivors x2.
            rows = lax.broadcasted_iota(jnp.int32, y.shape, 0) + row0
            cols = lax.broadcasted_iota(jnp.int32, y.shape, 1)
            keep = _keep_mask_i32(rows, cols, seed, li, y.shape[1])
            h = jnp.where(keep, y * 2.0, 0.0)

        o_ref[...] = h.astype(o_ref.dtype)

    return kernel


# -----------------------------------------------------------------------------
# Parameter init (xavier_uniform, gain('linear')=1.0, PyTorch (out,in) layout)
# -----------------------------------------------------------------------------
def init_prenet_weights(key, in_dim, sizes):
    in_sizes = [in_dim] + list(sizes[:-1])
    weights = []
    for fan_in, fan_out in zip(in_sizes, sizes):
        key, sub = jax.random.split(key)
        bound = math.sqrt(6.0 / (fan_in + fan_out))
        weights.append(jax.random.uniform(sub, (fan_out, fan_in), jnp.float32,
                                          minval=-bound, maxval=bound))
    return weights


def prepare_prenet_params(weights):
    """One-time prep: transpose to (in,out), zero-pad dims to 128 multiples, cast bf16."""
    dims = [weights[0].shape[1]] + [w.shape[0] for w in weights]
    dims_pad = [_round_up(d, LANE) for d in dims]
    padded = []
    for li, w in enumerate(weights):
        wt = jnp.transpose(w)                                    # (in, out)
        wt = jnp.pad(wt, ((0, dims_pad[li] - dims[li]),
                          (0, dims_pad[li + 1] - dims[li + 1])))
        padded.append(wt.astype(jnp.bfloat16))
    return padded, dims[-1]


# -----------------------------------------------------------------------------
# Forward pass
# -----------------------------------------------------------------------------
def prenet_forward(x, prepared, seed=0, tm_target=TM_TARGET):
    """x: (B, T, in_dim) float32 -> (B, T, sizes[-1]) float32."""
    padded_ws, out_dim = prepared
    n_layers = len(padded_ws)

    B, T, D = x.shape
    M = B * T
    K_pad = padded_ws[0].shape[0]
    N_last_pad = padded_ws[-1].shape[1]

    # Row tiling: multiple of 8 sublanes, capped at tm_target.
    m8 = _round_up(M, SUBLANE)
    tm = min(tm_target, m8)
    M_pad = _round_up(M, tm)

    x2 = jnp.pad(x.reshape(M, D).astype(jnp.float32),
                 ((0, M_pad - M), (0, K_pad - D)))

    seed_arr = jnp.asarray(seed, dtype=jnp.int32).reshape((1,))

    in_specs = [pl.BlockSpec((tm, K_pad), lambda i, s: (i, 0))]
    for w in padded_ws:
        kp, np_ = w.shape
        in_specs.append(pl.BlockSpec((kp, np_), lambda i, s: (0, 0)))  # resident

    out = pl.pallas_call(
        _make_prenet_kernel(n_layers, tm),
        out_shape=jax.ShapeDtypeStruct((M_pad, N_last_pad), jnp.float32),
        grid_spec=pltpu.PrefetchScalarGridSpec(
            num_scalar_prefetch=1,                 # seed lands in SMEM
            grid=(M_pad // tm,),
            in_specs=in_specs,
            out_specs=pl.BlockSpec((tm, N_last_pad), lambda i, s: (i, 0)),
        ),
        # Per-tile VMEM footprint (2x double-buffered x/out tiles + resident bf16
        # weights) is well under the 32 MiB default scoped limit even on v7x,
        # so no explicit vmem_limit_bytes is needed.
        compiler_params=pltpu.CompilerParams(
            dimension_semantics=("parallel",),     # megacore sharding on v7x
        ),
    )(seed_arr, x2, *padded_ws)

    return out[:M, :out_dim].reshape(B, T, out_dim)


# -----------------------------------------------------------------------------
# Pure-JAX reference (replays the exact same dropout bits)
# -----------------------------------------------------------------------------
def prenet_reference(x, prepared, seed=0):
    padded_ws, out_dim = prepared
    B, T, D = x.shape
    M = B * T
    K_pad = padded_ws[0].shape[0]
    seed_i = jnp.int32(seed)

    h = jnp.pad(x.reshape(M, D).astype(jnp.float32), ((0, 0), (0, K_pad - D)))
    for li, w in enumerate(padded_ws):
        y = jnp.dot(h.astype(jnp.bfloat16), w, preferred_element_type=jnp.float32)
        y = jnp.maximum(y, 0.0)
        rows = jnp.arange(M, dtype=jnp.int32)[:, None]
        cols = jnp.arange(w.shape[1], dtype=jnp.int32)[None, :]
        keep = _keep_mask_i32(rows, cols, seed_i, li, w.shape[1])
        h = jnp.where(keep, y * 2.0, 0.0)
    return h[:, :out_dim].reshape(B, T, out_dim)


if __name__ == "__main__":
    key = jax.random.PRNGKey(0)

    # Small shapes consistent with the module's forward: (B, T, in_dim)
    B, T = 2, 8
    in_dim = 32
    sizes = [32, 32]

    key, kx, kw = jax.random.split(key, 3)
    x = jax.random.normal(kx, (B, T, in_dim), dtype=jnp.float32)

    weights = init_prenet_weights(kw, in_dim, sizes)
    prepared = prepare_prenet_params(weights)

    out = prenet_forward(x, prepared, seed=1234)
    out = jax.block_until_ready(out)

    assert out.shape == (B, T, sizes[-1])
    assert out.dtype == jnp.float32
    assert bool(jnp.all(jnp.isfinite(out)))
    assert bool(jnp.all(out >= 0.0))                       # relu + nonneg scaling
    assert bool(jnp.any(out == 0.0)) and bool(jnp.any(out > 0.0))  # dropout/relu zeros

    ref = prenet_reference(x, prepared, seed=1234)
    assert bool(jnp.allclose(out, ref, rtol=2e-2, atol=2e-2))

    print("KERNEL_OK")
</pallas_src>

<mosaic_0001>
module attributes {stable_mosaic.version = 11 : i64} {
  func.func @kernel(%arg0: i32, %arg1: memref<1xi32, #tpu.memory_space<smem>>, %arg2: memref<16x128xf32, #tpu.memory_space<vmem>>, %arg3: memref<128x128xbf16, #tpu.memory_space<vmem>>, %arg4: memref<128x128xbf16, #tpu.memory_space<vmem>>, %arg5: memref<16x128xf32, #tpu.memory_space<vmem>>) attributes {dimension_semantics = [#tpu.dimension_semantics<parallel>], iteration_bounds = array<i64: 1>, scalar_prefetch = 1 : i64, scratch_operands = 0 : i64, tpu.core_type = #tpu.core_type<tc>, window_params = [{transform_indices = @transform_0, window_bounds = array<i64: 16, 128>}, {pipeline_mode = #tpu.pipeline_mode<synchronous>, transform_indices = @transform_1, window_bounds = array<i64: 128, 128>}, {pipeline_mode = #tpu.pipeline_mode<synchronous>, transform_indices = @transform_2, window_bounds = array<i64: 128, 128>}, {transform_indices = @transform_3, window_bounds = array<i64: 16, 128>}]} {
    %c0 = arith.constant 0 : index
    %0 = memref.load %arg1[%c0] : memref<1xi32, #tpu.memory_space<smem>>
    %c16_i32 = arith.constant 16 : i32
    %1 = arith.muli %arg0, %c16_i32 : i32
    %c0_0 = arith.constant 0 : index
    %c0_1 = arith.constant 0 : index
    %2 = vector.load %arg2[%c0_0, %c0_1] : memref<16x128xf32, #tpu.memory_space<vmem>>, vector<16x128xf32>
    %c0_2 = arith.constant 0 : index
    %c0_3 = arith.constant 0 : index
    %3 = vector.load %arg3[%c0_2, %c0_3] : memref<128x128xbf16, #tpu.memory_space<vmem>>, vector<128x128xbf16>
    %4 = arith.truncf %2 : vector<16x128xf32> to vector<16x128xbf16>
    %cst = arith.constant dense<0.000000e+00> : vector<16x128xf32>
    %5 = tpu.matmul %4, %3, %cst {dimension_numbers = #tpu.dot_dimension_numbers<[1], [0], [0], [1], [0, 0, 1, 1], [], []>} : vector<16x128xbf16>, vector<128x128xbf16>, vector<16x128xf32> -> vector<16x128xf32>
    %cst_4 = arith.constant 0.000000e+00 : f32
    %6 = vector.broadcast %cst_4 : f32 to vector<16x128xf32>
    %7 = arith.maximumf %5, %6 : vector<16x128xf32>
    %8 = tpu.iota {dimensions = array<i32: 0>} : vector<16x128xi32>
    %9 = vector.broadcast %1 : i32 to vector<16x128xi32>
    %10 = arith.addi %8, %9 : vector<16x128xi32>
    %11 = tpu.iota {dimensions = array<i32: 1>} : vector<16x128xi32>
    %c-1640531527_i32 = arith.constant -1640531527 : i32
    %12 = arith.addi %0, %c-1640531527_i32 : i32
    %c128_i32 = arith.constant 128 : i32
    %13 = vector.broadcast %c128_i32 : i32 to vector<16x128xi32>
    %14 = arith.muli %10, %13 : vector<16x128xi32>
    %15 = arith.addi %14, %11 : vector<16x128xi32>
    %c-1640531535_i32 = arith.constant -1640531535 : i32
    %16 = vector.broadcast %c-1640531535_i32 : i32 to vector<16x128xi32>
    %17 = arith.muli %15, %16 : vector<16x128xi32>
    %18 = vector.broadcast %12 : i32 to vector<16x128xi32>
    %19 = arith.addi %17, %18 : vector<16x128xi32>
    %c16_i32_5 = arith.constant 16 : i32
    %20 = vector.broadcast %c16_i32_5 : i32 to vector<16x128xi32>
    %21 = arith.shrsi %19, %20 : vector<16x128xi32>
    %22 = arith.xori %19, %21 : vector<16x128xi32>
    %c-2048144789_i32 = arith.constant -2048144789 : i32
    %23 = vector.broadcast %c-2048144789_i32 : i32 to vector<16x128xi32>
    %24 = arith.muli %22, %23 : vector<16x128xi32>
    %c13_i32 = arith.constant 13 : i32
    %25 = vector.broadcast %c13_i32 : i32 to vector<16x128xi32>
    %26 = arith.shrsi %24, %25 : vector<16x128xi32>
    %27 = arith.xori %24, %26 : vector<16x128xi32>
    %c-1028477387_i32 = arith.constant -1028477387 : i32
    %28 = vector.broadcast %c-1028477387_i32 : i32 to vector<16x128xi32>
    %29 = arith.muli %27, %28 : vector<16x128xi32>
    %c0_i32 = arith.constant 0 : i32
    %30 = vector.broadcast %c0_i32 : i32 to vector<16x128xi32>
    %31 = arith.cmpi sge, %29, %30 : vector<16x128xi32>
    %cst_6 = arith.constant 2.000000e+00 : f32
    %32 = vector.broadcast %cst_6 : f32 to vector<16x128xf32>
    %33 = arith.mulf %7, %32 : vector<16x128xf32>
    %cst_7 = arith.constant 0.000000e+00 : f32
    %34 = vector.broadcast %cst_7 : f32 to vector<16x128xf32>
    %35 = arith.select %31, %33, %34 : vector<16x128xi1>, vector<16x128xf32>
    %c0_8 = arith.constant 0 : index
    %c0_9 = arith.constant 0 : index
    %36 = vector.load %arg4[%c0_8, %c0_9] : memref<128x128xbf16, #tpu.memory_space<vmem>>, vector<128x128xbf16>
    %37 = arith.truncf %35 : vector<16x128xf32> to vector<16x128xbf16>
    %cst_10 = arith.constant dense<0.000000e+00> : vector<16x128xf32>
    %38 = tpu.matmul %37, %36, %cst_10 {dimension_numbers = #tpu.dot_dimension_numbers<[1], [0], [0], [1], [0, 0, 1, 1], [], []>} : vector<16x128xbf16>, vector<128x128xbf16>, vector<16x128xf32> -> vector<16x128xf32>
    %cst_11 = arith.constant 0.000000e+00 : f32
    %39 = vector.broadcast %cst_11 : f32 to vector<16x128xf32>
    %40 = arith.maximumf %38, %39 : vector<16x128xf32>
    %41 = tpu.iota {dimensions = array<i32: 0>} : vector<16x128xi32>
    %42 = vector.broadcast %1 : i32 to vector<16x128xi32>
    %43 = arith.addi %41, %42 : vector<16x128xi32>
    %44 = tpu.iota {dimensions = array<i32: 1>} : vector<16x128xi32>
    %c1013904242_i32 = arith.constant 1013904242 : i32
    %45 = arith.addi %0, %c1013904242_i32 : i32
    %c128_i32_12 = arith.constant 128 : i32
    %46 = vector.broadcast %c128_i32_12 : i32 to vector<16x128xi32>
    %47 = arith.muli %43, %46 : vector<16x128xi32>
    %48 = arith.addi %47, %44 : vector<16x128xi32>
    %c-1640531535_i32_13 = arith.constant -1640531535 : i32
    %49 = vector.broadcast %c-1640531535_i32_13 : i32 to vector<16x128xi32>
    %50 = arith.muli %48, %49 : vector<16x128xi32>
    %51 = vector.broadcast %45 : i32 to vector<16x128xi32>
    %52 = arith.addi %50, %51 : vector<16x128xi32>
    %c16_i32_14 = arith.constant 16 : i32
    %53 = vector.broadcast %c16_i32_14 : i32 to vector<16x128xi32>
    %54 = arith.shrsi %52, %53 : vector<16x128xi32>
    %55 = arith.xori %52, %54 : vector<16x128xi32>
    %c-2048144789_i32_15 = arith.constant -2048144789 : i32
    %56 = vector.broadcast %c-2048144789_i32_15 : i32 to vector<16x128xi32>
    %57 = arith.muli %55, %56 : vector<16x128xi32>
    %c13_i32_16 = arith.constant 13 : i32
    %58 = vector.broadcast %c13_i32_16 : i32 to vector<16x128xi32>
    %59 = arith.shrsi %57, %58 : vector<16x128xi32>
    %60 = arith.xori %57, %59 : vector<16x128xi32>
    %c-1028477387_i32_17 = arith.constant -1028477387 : i32
    %61 = vector.broadcast %c-1028477387_i32_17 : i32 to vector<16x128xi32>
    %62 = arith.muli %60, %61 : vector<16x128xi32>
    %c0_i32_18 = arith.constant 0 : i32
    %63 = vector.broadcast %c0_i32_18 : i32 to vector<16x128xi32>
    %64 = arith.cmpi sge, %62, %63 : vector<16x128xi32>
    %cst_19 = arith.constant 2.000000e+00 : f32
    %65 = vector.broadcast %cst_19 : f32 to vector<16x128xf32>
    %66 = arith.mulf %40, %65 : vector<16x128xf32>
    %cst_20 = arith.constant 0.000000e+00 : f32
    %67 = vector.broadcast %cst_20 : f32 to vector<16x128xf32>
    %68 = arith.select %64, %66, %67 : vector<16x128xi1>, vector<16x128xf32>
    %c0_21 = arith.constant 0 : index
    %c0_22 = arith.constant 0 : index
    %69 = vector.load %arg5[%c0_21, %c0_22] : memref<16x128xf32, #tpu.memory_space<vmem>>, vector<16x128xf32>
    tpu.vector_store %arg5[%c0_21, %c0_22], %68 {strides = array<i32>} : memref<16x128xf32, #tpu.memory_space<vmem>>, vector<16x128xf32>,
    return
  }
  func.func @transform_0(%arg0: i32, %arg1: memref<1xi32, #tpu.memory_space<smem>>) -> (i32, i32) {
    %c0_i32 = arith.constant 0 : i32
    %c0_i32_0 = arith.constant 0 : i32
    return %arg0, %c0_i32 : i32, i32
  }
  func.func @transform_1(%arg0: i32, %arg1: memref<1xi32, #tpu.memory_space<smem>>) -> (i32, i32) {
    %c0_i32 = arith.constant 0 : i32
    %c0_i32_0 = arith.constant 0 : i32
    %c0_i32_1 = arith.constant 0 : i32
    return %c0_i32, %c0_i32_0 : i32, i32
  }
  func.func @transform_2(%arg0: i32, %arg1: memref<1xi32, #tpu.memory_space<smem>>) -> (i32, i32) {
    %c0_i32 = arith.constant 0 : i32
    %c0_i32_0 = arith.constant 0 : i32
    %c0_i32_1 = arith.constant 0 : i32
    return %c0_i32, %c0_i32_0 : i32, i32
  }
  func.func @transform_3(%arg0: i32, %arg1: memref<1xi32, #tpu.memory_space<smem>>) -> (i32, i32) {
    %c0_i32 = arith.constant 0 : i32
    %c0_i32_0 = arith.constant 0 : i32
    return %arg0, %c0_i32 : i32, i32
  }
}

</mosaic_0001>

<llo_original>
// kernel: tpu_custom_call.1
$region0: #{tpu_custom_call.1}
  #allocation0 [shape = 'u32[]', space=smem, size = 0x4, offset = 0x4, fixed_abs, tag = 'smem constant byte address 0x4 - core index']
  #allocation1 [shape = 'u32[144,128]{1,0:T(1,128)}', space=vmem, size = 0x12000, scoped, tag = 'internal scratch']
  #allocation2 [shape = 's32[1]{0}', space=sflag, size = 0x4, scoped, tag = 'scoped memory for tpu_custom_call.1']
  #allocation3 [shape = 's32[1]{0:T(128)S(6)}', space=smem, size = 0x200, scoped, tag = 'prefetched SMEM operand 0']
  %s0 = inlined_call_operand.<no memory space> [shape: s32[1], index: 0, kind: input, shape index: {}]
  %s1 = inlined_call_operand.hbm [shape: f32[16,128], index: 1, kind: input, shape index: {}]
  %s2 = inlined_call_operand.hbm [shape: bf16[128,128], index: 2, kind: input, shape index: {}]
  %s3 = inlined_call_operand.hbm [shape: bf16[128,128], index: 3, kind: input, shape index: {}]
  %s4 = inlined_call_operand.hbm [shape: f32[16,128], index: 4, kind: output, shape index: {}]
  %s5 = sld [smem:[#allocation0]]
  $region34: #{tpu_custom_call.1} parent=0
    _
  %s7 = ssub.s32 1, %s5
  %s8 = scalar_select 0, %s7, %s5
  %9 = sst [smem:[#allocation3]] %s0
  $region1: #{tpu_custom_call.1} parent=0
    #allocation4 [shape = 'u8[8192]{0}', space=vmem, size = 0x2000, scoped, tag = 'input window, operand 1, single buffered']
    #allocation5 [shape = 's32[1]{0}', space=sflag, size = 0x4, scoped, tag = 'scoped memory for tpu_custom_call.1']
    #allocation6 [shape = 's32[1]{0}', space=sflag, size = 0x4, scoped, tag = 'scoped memory for tpu_custom_call.1']
    #allocation7 [shape = 'u8[32768]{0}', space=vmem, size = 0x8000, scoped, tag = 'input window, operand 2, single buffered']
    #allocation8 [shape = 's32[1]{0}', space=sflag, size = 0x4, scoped, tag = 'scoped memory for tpu_custom_call.1']
    #allocation9 [shape = 'u8[32768]{0}', space=vmem, size = 0x8000, scoped, tag = 'input window, operand 3, single buffered']
    #allocation10 [shape = 'u8[8192]{0}', space=vmem, size = 0x2000, scoped, tag = 'output window, operand 0, single buffered']
    %10 = vsyncpa [#allocation5], 0
    %11 = vsyncpa [#allocation8], 0
    %12 = vsyncpa [#allocation6], 0
    // Predicated region
    $region2: #{tpu_custom_call.1} parent=1 // pred_check
      _
    $region3: #{tpu_custom_call.1} parent=1 // pred_check_branch
      %14 = sbr.rel (0) target = $region5
    $region4: #{tpu_custom_call.1} parent=1 // pred_region
      %s16 = ssub.s32 256, 256
      %17 = vsyncadd [#allocation5], %s16
      %s18 = sshll.u32 [#allocation4], 4
      %s19 = int_to_ptr.vmem [resolvable:$true] %s18
      %24 = dma.hbm_to_vmem [thread:$0]  %s1, 256, %s19, [#allocation5], 128, 128, 8
    $region5: #{tpu_custom_call.1} parent=1 // pred_fallthru
      _
    // Predicated region
    $region6: #{tpu_custom_call.1} parent=1 // pred_check
      _
    $region7: #{tpu_custom_call.1} parent=1 // pred_check_branch
      %26 = sbr.rel (0) target = $region9
    $region8: #{tpu_custom_call.1} parent=1 // pred_region
      %s28 = ssub.s32 1024, 1024
      %29 = vsyncadd [#allocation8], %s28
      %s30 = sshll.u32 [#allocation7], 4
      %s31 = int_to_ptr.vmem [resolvable:$true] %s30
      %36 = dma.hbm_to_vmem [thread:$0]  %s2, 1024, %s31, [#allocation8], 64, 64, 4
    $region9: #{tpu_custom_call.1} parent=1 // pred_fallthru
      _
    // Predicated region
    $region10: #{tpu_custom_call.1} parent=1 // pred_check
      _
    $region11: #{tpu_custom_call.1} parent=1 // pred_check_branch
      %38 = sbr.rel (0) target = $region13
    $region12: #{tpu_custom_call.1} parent=1 // pred_region
      %s40 = ssub.s32 1024, 1024
      %41 = vsyncadd [#allocation8], %s40
      %s42 = sshll.u32 [#allocation9], 4
      %s43 = int_to_ptr.vmem [resolvable:$true] %s42
      %48 = dma.hbm_to_vmem [thread:$0]  %s3, 1024, %s43, [#allocation8], 64, 64, 4
    $region13: #{tpu_custom_call.1} parent=1 // pred_fallthru
      _
    // Predicated region
    $region14: #{tpu_custom_call.1} parent=1 // pred_check
      _
    $region15: #{tpu_custom_call.1} parent=1 // pred_check_branch
      %50 = sbr.rel (0) target = $region17
    $region16: #{tpu_custom_call.1} parent=1 // pred_region
      %51 = dma.done [#allocation5], 256
    $region17: #{tpu_custom_call.1} parent=1 // pred_fallthru
      _
    // Predicated region
    $region18: #{tpu_custom_call.1} parent=1 // pred_check
      _
    $region19: #{tpu_custom_call.1} parent=1 // pred_check_branch
      %53 = sbr.rel (0) target = $region21
    $region20: #{tpu_custom_call.1} parent=1 // pred_region
      %54 = dma.done [#allocation8], 1024
    $region21: #{tpu_custom_call.1} parent=1 // pred_fallthru
      _
    // Predicated region
    $region22: #{tpu_custom_call.1} parent=1 // pred_check
      _
    $region23: #{tpu_custom_call.1} parent=1 // pred_check_branch
      %56 = sbr.rel (0) target = $region25
    $region24: #{tpu_custom_call.1} parent=1 // pred_region
      %57 = dma.done [#allocation8], 1024
    $region25: #{tpu_custom_call.1} parent=1 // pred_fallthru
      _
    %s59 = sld [smem:[#allocation3]]
    %s60 = smul.u32 0, 16
    %v61 = vld [vmem:[#allocation4] sm:$0xff]
    %v62 = vld [vmem:[#allocation4 + $0x8] sm:$0xff]
    %v63 = vld [vmem:[#allocation7] sm:$0xf]
    %v64 = vld [vmem:[#allocation7 + $0x4] sm:$0xf]
    %v65 = vld [vmem:[#allocation7 + $0x8] sm:$0xf]
    %v66 = vld [vmem:[#allocation7 + $0xc] sm:$0xf]
    %v67 = vld [vmem:[#allocation7 + $0x10] sm:$0xf]
    %v68 = vld [vmem:[#allocation7 + $0x14] sm:$0xf]
    %v69 = vld [vmem:[#allocation7 + $0x18] sm:$0xf]
    %v70 = vld [vmem:[#allocation7 + $0x1c] sm:$0xf]
    %v71 = vld [vmem:[#allocation7 + $0x20] sm:$0xf]
    %v72 = vld [vmem:[#allocation7 + $0x24] sm:$0xf]
    %v73 = vld [vmem:[#allocation7 + $0x28] sm:$0xf]
    %v74 = vld [vmem:[#allocation7 + $0x2c] sm:$0xf]
    %v75 = vld [vmem:[#allocation7 + $0x30] sm:$0xf]
    %v76 = vld [vmem:[#allocation7 + $0x34] sm:$0xf]
    %v77 = vld [vmem:[#allocation7 + $0x38] sm:$0xf]
    %v78 = vld [vmem:[#allocation7 + $0x3c] sm:$0xf]
    %v79 = vpack.c.bf16 %v62, %v61
    %v96 = vunpack.c.l.b16 %v63
    %v97 = vunpack.c.l.b16 %v64
    %v98 = vunpack.c.l.b16 %v65
    %v99 = vunpack.c.l.b16 %v66
    %v100 = vunpack.c.l.b16 %v67
    %v101 = vunpack.c.l.b16 %v68
    %v102 = vunpack.c.l.b16 %v69
    %v103 = vunpack.c.l.b16 %v70
    %v104 = vunpack.c.l.b16 %v71
    %v105 = vunpack.c.l.b16 %v72
    %v106 = vunpack.c.l.b16 %v73
    %v107 = vunpack.c.l.b16 %v74
    %v108 = vunpack.c.l.b16 %v75
    %v109 = vunpack.c.l.b16 %v76
    %v110 = vunpack.c.l.b16 %v77
    %v111 = vunpack.c.l.b16 %v78
    %v112 = vpack.c.b16 %v97, %v96
    %v113 = vpack.c.b16 %v99, %v98
    %v114 = vpack.c.b16 %v101, %v100
    %v115 = vpack.c.b16 %v103, %v102
    %v116 = vpack.c.b16 %v105, %v104
    %v117 = vpack.c.b16 %v107, %v106
    %v118 = vpack.c.b16 %v109, %v108
    %v119 = vpack.c.b16 %v111, %v110
    %128 = vmatprep.subr.bf16.mxu0 0
    %129 = vmatpush1.bf16.msra.mxu0 %v119
    %130 = vmatprep.subr.bf16.mxu0 0
    %131 = vmatpush1.bf16.msra.mxu0 %v118
    %132 = vmatprep.subr.bf16.mxu0 0
    %133 = vmatpush1.bf16.msra.mxu0 %v117
    %134 = vmatprep.subr.bf16.mxu0 0
    %135 = vmatpush1.bf16.msra.mxu0 %v116
    %136 = vmatprep.subr.bf16.mxu0 0
    %137 = vmatpush1.bf16.msra.mxu0 %v115
    %138 = vmatprep.subr.bf16.mxu0 0
    %139 = vmatpush1.bf16.msra.mxu0 %v114
    %140 = vmatprep.subr.bf16.mxu0 0
    %141 = vmatpush1.bf16.msra.mxu0 %v113
    %142 = vmatprep.subr.bf16.mxu0 0
    %143 = vmatpush1.bf16.msra.mxu0 %v112
    %144 = vmatprep.subr.bf16.mxu0 0
    %145 = vmatpush2.bf16.msra.mxu0 0
    %146 = vmatprep.subr.bf16.mxu0 0
    %147 = vmatpush2.bf16.msra.mxu0 0
    %148 = vmatprep.subr.bf16.mxu0 0
    %149 = vmatpush2.bf16.msra.mxu0 0
    %150 = vmatprep.subr.bf16.mxu0 0
    %151 = vmatpush2.bf16.msra.mxu0 0
    %152 = vmatprep.subr.bf16.mxu0 0
    %153 = vmatpush2.bf16.msra.mxu0 0
    %154 = vmatprep.subr.bf16.mxu0 0
    %155 = vmatpush2.bf16.msra.mxu0 0
    %156 = vmatprep.subr.bf16.mxu0 0
    %157 = vmatpush2.bf16.msra.mxu0 0
    %158 = vmatprep.subr.bf16.mxu0 0
    %159 = vmatpush2.bf16.msra.mxu0 0
    %160 = vmatprep.mubr.bf16.mxu0 0
    %161 = vmatmul.mubr.bf16.gmra.mxu0 %v79
    %v162 = vpop.f32.mrf.mxu0
    %v163 = vadd.f32 0.0, %v162
    %v164 = vpop.f32.mrf.mxu0
    %v165 = vpop.f32.mrf.mxu0
    %v166 = vadd.f32 0.0, %v165
    %v167 = vpop.f32.mrf.mxu0
    %168 = vdwg.mxu0
    %v169 = vmax.f32 %v163, 0.0
    %v170 = vmax.f32 %v166, 0.0
    %v171 = vlaneseq
    %v172 = vshrl.u32 %v171, 7
    %v173 = vadd.s32 %v172, 8
    %v174 = vstv %s60
    %v175 = vadd.s32 %v172, %v174
    %v176 = vadd.s32 %v173, %v174
    %v177 = vlaneseq
    %v178 = vand.u32 %v177, 127
    %s179 = sadd.s32 %s59, 2654435769
    %v180 = vmul.u32 %v175, 128
    %v181 = vmul.u32 %v176, 128
    %v182 = vadd.s32 %v180, %v178
    %v183 = vadd.s32 %v181, %v178
    %v184 = vmul.u32 %v182, 2654435761
    %v185 = vmul.u32 %v183, 2654435761
    %v186 = vstv %s179
    %v187 = vadd.s32 %v184, %v186
    %v188 = vadd.s32 %v185, %v186
    %v189 = vshra.s32 %v187, 16
    %v190 = vshra.s32 %v188, 16
    %v191 = vxor.u32 %v187, %v189
    %v192 = vxor.u32 %v188, %v190
    %v193 = vmul.u32 %v191, 2246822507
    %v194 = vmul.u32 %v192, 2246822507
    %v195 = vshra.s32 %v193, 13
    %v196 = vshra.s32 %v194, 13
    %v197 = vxor.u32 %v193, %v195
    %v198 = vxor.u32 %v194, %v196
    %v199 = vmul.u32 %v197, 3266489909
    %v200 = vmul.u32 %v198, 3266489909
    %vm201 = vcmp.ge.s32.totalorder %v199, 0
    %vm202 = vcmp.ge.s32.totalorder %v200, 0
    %v203 = vmul.f32 %v169, 2.0
    %v204 = vmul.f32 %v170, 2.0
    %v205 = vsel %vm201, %v203, 0.0
    %v206 = vsel %vm202, %v204, 0.0
    %v207 = vld [vmem:[#allocation9] sm:$0xf]
    %v208 = vld [vmem:[#allocation9 + $0x4] sm:$0xf]
    %v209 = vld [vmem:[#allocation9 + $0x8] sm:$0xf]
    %v210 = vld [vmem:[#allocation9 + $0xc] sm:$0xf]
    %v211 = vld [vmem:[#allocation9 + $0x10] sm:$0xf]
    %v212 = vld [vmem:[#allocation9 + $0x14] sm:$0xf]
    %v213 = vld [vmem:[#allocation9 + $0x18] sm:$0xf]
    %v214 = vld [vmem:[#allocation9 + $0x1c] sm:$0xf]
    %v215 = vld [vmem:[#allocation9 + $0x20] sm:$0xf]
    %v216 = vld [vmem:[#allocation9 + $0x24] sm:$0xf]
    %v217 = vld [vmem:[#allocation9 + $0x28] sm:$0xf]
    %v218 = vld [vmem:[#allocation9 + $0x2c] sm:$0xf]
    %v219 = vld [vmem:[#allocation9 + $0x30] sm:$0xf]
    %v220 = vld [vmem:[#allocation9 + $0x34] sm:$0xf]
    %v221 = vld [vmem:[#allocation9 + $0x38] sm:$0xf]
    %v222 = vld [vmem:[#allocation9 + $0x3c] sm:$0xf]
    %v223 = vpack.c.bf16 %v206, %v205
    %v240 = vunpack.c.l.b16 %v207
    %v241 = vunpack.c.l.b16 %v208
    %v242 = vunpack.c.l.b16 %v209
    %v243 = vunpack.c.l.b16 %v210
    %v244 = vunpack.c.l.b16 %v211
    %v245 = vunpack.c.l.b16 %v212
    %v246 = vunpack.c.l.b16 %v213
    %v247 = vunpack.c.l.b16 %v214
    %v248 = vunpack.c.l.b16 %v215
    %v249 = vunpack.c.l.b16 %v216
    %v250 = vunpack.c.l.b16 %v217
    %v251 = vunpack.c.l.b16 %v218
    %v252 = vunpack.c.l.b16 %v219
    %v253 = vunpack.c.l.b16 %v220
    %v254 = vunpack.c.l.b16 %v221
    %v255 = vunpack.c.l.b16 %v222
    %v256 = vpack.c.b16 %v241, %v240
    %v257 = vpack.c.b16 %v243, %v242
    %v258 = vpack.c.b16 %v245, %v244
    %v259 = vpack.c.b16 %v247, %v246
    %v260 = vpack.c.b16 %v249, %v248
    %v261 = vpack.c.b16 %v251, %v250
    %v262 = vpack.c.b16 %v253, %v252
    %v263 = vpack.c.b16 %v255, %v254
    %272 = vmatprep.subr.bf16.mxu0 0
    %273 = vmatpush1.bf16.msra.mxu0 %v263
    %274 = vmatprep.subr.bf16.mxu0 0
    %275 = vmatpush1.bf16.msra.mxu0 %v262
    %276 = vmatprep.subr.bf16.mxu0 0
    %277 = vmatpush1.bf16.msra.mxu0 %v261
    %278 = vmatprep.subr.bf16.mxu0 0
    %279 = vmatpush1.bf16.msra.mxu0 %v260
    %280 = vmatprep.subr.bf16.mxu0 0
    %281 = vmatpush1.bf16.msra.mxu0 %v259
    %282 = vmatprep.subr.bf16.mxu0 0
    %283 = vmatpush1.bf16.msra.mxu0 %v258
    %284 = vmatprep.subr.bf16.mxu0 0
    %285 = vmatpush1.bf16.msra.mxu0 %v257
    %286 = vmatprep.subr.bf16.mxu0 0
    %287 = vmatpush1.bf16.msra.mxu0 %v256
    %288 = vmatprep.subr.bf16.mxu0 0
    %289 = vmatpush2.bf16.msra.mxu0 0
    %290 = vmatprep.subr.bf16.mxu0 0
    %291 = vmatpush2.bf16.msra.mxu0 0
    %292 = vmatprep.subr.bf16.mxu0 0
    %293 = vmatpush2.bf16.msra.mxu0 0
    %294 = vmatprep.subr.bf16.mxu0 0
    %295 = vmatpush2.bf16.msra.mxu0 0
    %296 = vmatprep.subr.bf16.mxu0 0
    %297 = vmatpush2.bf16.msra.mxu0 0
    %298 = vmatprep.subr.bf16.mxu0 0
    %299 = vmatpush2.bf16.msra.mxu0 0
    %300 = vmatprep.subr.bf16.mxu0 0
    %301 = vmatpush2.bf16.msra.mxu0 0
    %302 = vmatprep.subr.bf16.mxu0 0
    %303 = vmatpush2.bf16.msra.mxu0 0
    %304 = vmatprep.mubr.bf16.mxu0 0
    %305 = vmatmul.mubr.bf16.gmra.mxu0 %v223
    %v306 = vpop.f32.mrf.mxu0
    %v307 = vadd.f32 0.0, %v306
    %v308 = vpop.f32.mrf.mxu0
    %v309 = vpop.f32.mrf.mxu0
    %v310 = vadd.f32 0.0, %v309
    %v311 = vpop.f32.mrf.mxu0
    %312 = vdwg.mxu0
    %v313 = vmax.f32 %v307, 0.0
    %v314 = vmax.f32 %v310, 0.0
    %s315 = sadd.s32 %s59, 1013904242
    %v316 = vstv %s315
    %v317 = vadd.s32 %v184, %v316
    %v318 = vadd.s32 %v185, %v316
    %v319 = vshra.s32 %v317, 16
    %v320 = vshra.s32 %v318, 16
    %v321 = vxor.u32 %v317, %v319
    %v322 = vxor.u32 %v318, %v320
    %v323 = vmul.u32 %v321, 2246822507
    %v324 = vmul.u32 %v322, 2246822507
    %v325 = vshra.s32 %v323, 13
    %v326 = vshra.s32 %v324, 13
    %v327 = vxor.u32 %v323, %v325
    %v328 = vxor.u32 %v324, %v326
    %v329 = vmul.u32 %v327, 3266489909
    %v330 = vmul.u32 %v328, 3266489909
    %vm331 = vcmp.ge.s32.totalorder %v329, 0
    %vm332 = vcmp.ge.s32.totalorder %v330, 0
    %v333 = vmul.f32 %v313, 2.0
    %v334 = vmul.f32 %v314, 2.0
    %v335 = vsel %vm331, %v333, 0.0
    %v336 = vsel %vm332, %v334, 0.0
    %337 = vst [vmem:[#allocation10] sm:$0xff] %v335
    %338 = vst [vmem:[#allocation10 + $0x8] sm:$0xff] %v336
    // Predicated region
    $region26: #{tpu_custom_call.1} parent=1 // pred_check
      _
    $region27: #{tpu_custom_call.1} parent=1 // pred_check_branch
      %340 = sbr.rel (0) target = $region29
    $region28: #{tpu_custom_call.1} parent=1 // pred_region
      %s342 = ssub.s32 256, 256
      %343 = vsyncadd [#allocation6], %s342
      %s344 = sshll.u32 [#allocation10], 4
      %s345 = int_to_ptr.vmem [resolvable:$true] %s344
      %350 = dma.vmem_to_hbm [thread:$0]  %s345, 256, %s4, [#allocation6], 128, 128, 8
    $region29: #{tpu_custom_call.1} parent=1 // pred_fallthru
      _
    // Predicated region
    $region30: #{tpu_custom_call.1} parent=1 // pred_check
      _
    $region31: #{tpu_custom_call.1} parent=1 // pred_check_branch
      %352 = sbr.rel (0) target = $region33
    $region32: #{tpu_custom_call.1} parent=1 // pred_region
      %353 = dma.done [#allocation6], 256
    $region33: #{tpu_custom_call.1} parent=1 // pred_fallthru
      _
    %354 = vsyncpa [#allocation5], 1
    %355 = vsyncpa [#allocation8], 1
    %356 = vsyncpa [#allocation6], 1

</llo_original>
